<compile_context>
chip_gen: v5e
topology: v5e:2x2
jax: 0.10.0
libtpu: 0.0.40
codegen_flags: <defaults>
</compile_context>

<pallas_src>
import functools

import jax
import jax.numpy as jnp
from jax import lax
from jax.experimental import pallas as pl
from jax.experimental.pallas import tpu as pltpu


def _round_up(x, m):
    return ((x + m - 1) // m) * m


def _choose_tile(dim, max_tile, base):
    """Pick (tile, padded_dim): tile is base-aligned, padded_dim % tile == 0."""
    if dim <= max_tile:
        t = _round_up(dim, base)
        return t, t
    return max_tile, _round_up(dim, max_tile)


def _matmul_kernel(a_ref, b_ref, o_ref, acc_ref, *, trans_b):
    # P3 accumulator pattern: K is the last ("arbitrary") grid axis.
    @pl.when(pl.program_id(2) == 0)
    def _init():
        acc_ref[...] = jnp.zeros_like(acc_ref)

    a = a_ref[...]
    b = b_ref[...]
    if trans_b:
        # C[m, n] += sum_k A[m, k] * B[n, k]  -- transpose folded into the MXU
        # operand path instead of a host-side weight.T.
        acc_ref[...] += lax.dot_general(
            a, b,
            dimension_numbers=(((1,), (1,)), ((), ())),
            preferred_element_type=jnp.float32,
        )
    else:
        acc_ref[...] += jnp.dot(a, b, preferred_element_type=jnp.float32)

    @pl.when(pl.program_id(2) == pl.num_programs(2) - 1)
    def _finalize():
        o_ref[...] = acc_ref[...].astype(o_ref.dtype)


@functools.partial(jax.jit, static_argnames=("trans_b",))
def _matmul_pallas(a, b, *, trans_b=False):
    """C = A @ B  (trans_b=False, B:(K,N))   or   C = A @ B^T  (trans_b=True, B:(N,K))."""
    M, K = a.shape
    if trans_b:
        N, Kb = b.shape
    else:
        Kb, N = b.shape
    assert K == Kb, (a.shape, b.shape, trans_b)

    # Compute in the promoted operand dtype (no blanket f32 up-cast);
    # accumulation is always f32 on the MXU.
    out_dtype = jnp.promote_types(a.dtype, b.dtype)
    if a.dtype != out_dtype:
        a = a.astype(out_dtype)
    if b.dtype != out_dtype:
        b = b.astype(out_dtype)

    # Lane dims (N, K) 128-aligned; sublane dim (M) 8-aligned.  Max tiles keep
    # the double-buffered footprint ~4-5 MiB (fits v5e's 16 MiB scoped default
    # and v7x's 64 MiB VMEM with plenty of headroom).
    tm, Mp = _choose_tile(M, 512, 8)
    tn, Np = _choose_tile(N, 256, 128)
    tk, Kp = _choose_tile(K, 512, 128)

    a_p = a if (Mp == M and Kp == K) else jnp.pad(a, ((0, Mp - M), (0, Kp - K)))
    if trans_b:
        b_p = b if (Np == N and Kp == K) else jnp.pad(b, ((0, Np - N), (0, Kp - K)))
        b_spec = pl.BlockSpec((tn, tk), lambda i, j, k: (j, k))
    else:
        b_p = b if (Kp == K and Np == N) else jnp.pad(b, ((0, Kp - K), (0, Np - N)))
        b_spec = pl.BlockSpec((tk, tn), lambda i, j, k: (k, j))

    grid = (Mp // tm, Np // tn, Kp // tk)
    itemsize = jnp.dtype(out_dtype).itemsize
    bytes_accessed = (Mp * Kp + Np * Kp + Mp * Np) * itemsize

    out_p = pl.pallas_call(
        functools.partial(_matmul_kernel, trans_b=trans_b),
        out_shape=jax.ShapeDtypeStruct((Mp, Np), out_dtype),
        grid_spec=pltpu.PrefetchScalarGridSpec(
            num_scalar_prefetch=0,
            grid=grid,
            in_specs=[
                pl.BlockSpec((tm, tk), lambda i, j, k: (i, k)),
                b_spec,
            ],
            out_specs=pl.BlockSpec((tm, tn), lambda i, j, k: (i, j)),
            scratch_shapes=[pltpu.VMEM((tm, tn), jnp.float32)],
        ),
        compiler_params=pltpu.CompilerParams(
            dimension_semantics=("parallel", "parallel", "arbitrary"),
            vmem_limit_bytes=64 * 1024 * 1024,
        ),
        cost_estimate=pl.CostEstimate(
            flops=2 * Mp * Np * Kp,
            transcendentals=0,
            bytes_accessed=bytes_accessed,
        ),
    )(a_p, b_p)

    if Mp == M and Np == N:
        return out_p
    return out_p[:M, :N]


def rotate_forward(x, weight, transpose=False):
    """Pallas equivalent of RotateModule.forward.

    transpose=True  : x @ weight      (x: (..., H))
    transpose=False : weight @ x      (x: (H, N) or (..., H, N), W broadcast over batch)
    """
    H = weight.shape[0]
    if transpose:
        lead = x.shape[:-1]
        y = _matmul_pallas(x.reshape(-1, H), weight)
        return y.reshape(*lead, H)

    # W @ x: hidden sits on axis -2.  Flatten with hidden last (lane-dense)
    # and contract against W's second axis in-kernel (NT form) -- no weight.T,
    # no masked partial stores when the column count N is tiny.
    xt = jnp.swapaxes(x, -1, -2)                                  # (..., N, H)
    lead = xt.shape[:-1]
    y = _matmul_pallas(xt.reshape(-1, H), weight, trans_b=True)   # rows of (W @ x)^T
    y = y.reshape(*lead, H)
    return jnp.swapaxes(y, -1, -2)                                # (..., H, N)


def make_rotation(key, h):
    """Deterministic orthogonal (rotation) matrix, mirroring an R_init parameter."""
    g = jax.random.normal(key, (h, h), dtype=jnp.float32)
    q, r = jnp.linalg.qr(g)
    q = q * jnp.sign(jnp.diag(r))[None, :]
    return q.astype(jnp.float32)


if __name__ == "__main__":
    key = jax.random.PRNGKey(0)
    k_w, k_x1, k_x2, k_x3 = jax.random.split(key, 4)

    H = 32       # hidden size of the rotation
    N = 8        # "columns" for the W @ x path
    B = 2        # batch

    weight = make_rotation(k_w, H)                       # (32, 32) float32

    # transpose=False path (2-D): W @ x, x is (H, N)
    x_cols = jax.random.normal(k_x1, (H, N), dtype=jnp.float32)
    y0 = jax.block_until_ready(rotate_forward(x_cols, weight, transpose=False))
    ref0 = weight @ x_cols
    assert y0.shape == (H, N)
    assert jnp.allclose(y0, ref0, atol=1e-5, rtol=1e-5)

    # transpose=False path (batched): W @ x[b], x is (B, H, N)
    x_bcols = jax.random.normal(k_x3, (B, H, N), dtype=jnp.float32)
    y1 = jax.block_until_ready(rotate_forward(x_bcols, weight, transpose=False))
    ref1 = weight @ x_bcols
    assert y1.shape == (B, H, N)
    assert jnp.allclose(y1, ref1, atol=1e-5, rtol=1e-5)

    # transpose=True path: x @ W, x is (B, N, H) with hidden last
    x_rows = jax.random.normal(k_x2, (B, N, H), dtype=jnp.float32)
    y2 = jax.block_until_ready(rotate_forward(x_rows, weight, transpose=True))
    ref2 = x_rows @ weight
    assert y2.shape == (B, N, H)
    assert jnp.allclose(y2, ref2, atol=1e-5, rtol=1e-5)

    print("KERNEL_OK")
</pallas_src>

<mosaic_0001>
module attributes {stable_mosaic.version = 11 : i64} {
  func.func @_matmul_kernel(%arg0: i32, %arg1: i32, %arg2: i32, %arg3: memref<8x128xf32, #tpu.memory_space<vmem>>, %arg4: memref<128x128xf32, #tpu.memory_space<vmem>>, %arg5: memref<8x128xf32, #tpu.memory_space<vmem>>, %arg6: memref<8x128xf32, #tpu.memory_space<vmem>>) attributes {dimension_semantics = [#tpu.dimension_semantics<parallel>, #tpu.dimension_semantics<parallel>, #tpu.dimension_semantics<arbitrary>], iteration_bounds = array<i64: 1, 1, 1>, scalar_prefetch = 0 : i64, scratch_operands = 1 : i64, tpu.core_type = #tpu.core_type<tc>, window_params = [{transform_indices = @transform_0, window_bounds = array<i64: 8, 128>}, {transform_indices = @transform_1, window_bounds = array<i64: 128, 128>}, {transform_indices = @transform_2, window_bounds = array<i64: 8, 128>}]} {
    %c0_i32 = arith.constant 0 : i32
    %0 = arith.cmpi eq, %arg2, %c0_i32 : i32
    %1 = arith.extui %0 : i1 to i32
    %c0_i32_0 = arith.constant 0 : i32
    %2 = arith.cmpi ne, %1, %c0_i32_0 : i32
    scf.if %2 {
      %cst_10 = arith.constant 0.000000e+00 : f32
      %12 = vector.broadcast %cst_10 : f32 to vector<8x128xf32>
      %c0_11 = arith.constant 0 : index
      %c0_12 = arith.constant 0 : index
      %13 = vector.load %arg6[%c0_11, %c0_12] : memref<8x128xf32, #tpu.memory_space<vmem>>, vector<8x128xf32>
      tpu.vector_store %arg6[%c0_11, %c0_12], %12 {strides = array<i32>} : memref<8x128xf32, #tpu.memory_space<vmem>>, vector<8x128xf32>,
    } else {
    }
    %c0 = arith.constant 0 : index
    %c0_1 = arith.constant 0 : index
    %3 = vector.load %arg3[%c0, %c0_1] : memref<8x128xf32, #tpu.memory_space<vmem>>, vector<8x128xf32>
    %c0_2 = arith.constant 0 : index
    %c0_3 = arith.constant 0 : index
    %4 = vector.load %arg4[%c0_2, %c0_3] : memref<128x128xf32, #tpu.memory_space<vmem>>, vector<128x128xf32>
    %c0_4 = arith.constant 0 : index
    %c0_5 = arith.constant 0 : index
    %5 = vector.load %arg6[%c0_4, %c0_5] : memref<8x128xf32, #tpu.memory_space<vmem>>, vector<8x128xf32>
    %cst = arith.constant dense<0.000000e+00> : vector<8x128xf32>
    %6 = tpu.matmul %3, %4, %cst {dimension_numbers = #tpu.dot_dimension_numbers<[1], [1], [0], [0], [0, 0, 1, 0], [], []>} : vector<8x128xf32>, vector<128x128xf32>, vector<8x128xf32> -> vector<8x128xf32>
    %7 = arith.addf %5, %6 : vector<8x128xf32>
    %c0_6 = arith.constant 0 : index
    %c0_7 = arith.constant 0 : index
    %8 = vector.load %arg6[%c0_6, %c0_7] : memref<8x128xf32, #tpu.memory_space<vmem>>, vector<8x128xf32>
    tpu.vector_store %arg6[%c0_6, %c0_7], %7 {strides = array<i32>} : memref<8x128xf32, #tpu.memory_space<vmem>>, vector<8x128xf32>,
    %c0_i32_8 = arith.constant 0 : i32
    %9 = arith.cmpi eq, %arg2, %c0_i32_8 : i32
    %10 = arith.extui %9 : i1 to i32
    %c0_i32_9 = arith.constant 0 : i32
    %11 = arith.cmpi ne, %10, %c0_i32_9 : i32
    scf.if %11 {
      %c0_10 = arith.constant 0 : index
      %c0_11 = arith.constant 0 : index
      %12 = vector.load %arg6[%c0_10, %c0_11] : memref<8x128xf32, #tpu.memory_space<vmem>>, vector<8x128xf32>
      %c0_12 = arith.constant 0 : index
      %c0_13 = arith.constant 0 : index
      %13 = vector.load %arg5[%c0_12, %c0_13] : memref<8x128xf32, #tpu.memory_space<vmem>>, vector<8x128xf32>
      tpu.vector_store %arg5[%c0_12, %c0_13], %12 {strides = array<i32>} : memref<8x128xf32, #tpu.memory_space<vmem>>, vector<8x128xf32>,
    } else {
    }
    return
  }
  func.func @transform_0(%arg0: i32, %arg1: i32, %arg2: i32) -> (i32, i32) {
    %c0_i32 = arith.constant 0 : i32
    return %arg0, %arg2 : i32, i32
  }
  func.func @transform_1(%arg0: i32, %arg1: i32, %arg2: i32) -> (i32, i32) {
    %c0_i32 = arith.constant 0 : i32
    return %arg1, %arg2 : i32, i32
  }
  func.func @transform_2(%arg0: i32, %arg1: i32, %arg2: i32) -> (i32, i32) {
    %c0_i32 = arith.constant 0 : i32
    return %arg0, %arg1 : i32, i32
  }
}

</mosaic_0001>

<llo_original>
// kernel: _matmul_pallas.1
$region0: #{_matmul_pallas.1}
  #allocation0 [shape = 'u32[]', space=smem, size = 0x4, offset = 0x4, fixed_abs, tag = 'smem constant byte address 0x4 - core index']
  #allocation1 [shape = 'u32[72,128]{1,0:T(1,128)}', space=vmem, size = 0x9000, scoped, tag = 'internal scratch']
  #allocation2 [shape = 'f32[8,128]{1,0:T(8,128)}', space=vmem, size = 0x1000, scoped, tag = 'scratch operand']
  %s0 = inlined_call_operand.vmem [shape: f32[8,128], index: 0, kind: input, shape index: {}]
  %s1 = inlined_call_operand.vmem [shape: f32[128,128], index: 1, kind: input, shape index: {}]
  %s2 = inlined_call_operand.hbm [shape: f32[8,128], index: 2, kind: output, shape index: {}]
  %s3 = sld [smem:[#allocation0]]
  $region26: #{_matmul_pallas.1} parent=0
    _
  %s5 = ssub.s32 1, %s3
  %s6 = scalar_select 0, %s5, %s3
  $region1: #{_matmul_pallas.1} parent=0
    #allocation3 [shape = 'u8[4096]{0}', space=vmem, size = 0x1000, scoped, tag = 'output window, operand 0, single buffered']
    #allocation4 [shape = 's32[1]{0}', space=sflag, size = 0x4, scoped, tag = 'scoped memory for _matmul_pallas.1']
    %7 = vsyncpa [#allocation4], 0
    // Predicated region
    $region2: #{_matmul_pallas.1} parent=1 // pred_check
      _
    $region3: #{_matmul_pallas.1} parent=1 // pred_check_branch
      %9 = sbr.rel (0) target = $region5
    $region4: #{_matmul_pallas.1} parent=1 // pred_region
      _
    $region5: #{_matmul_pallas.1} parent=1 // pred_fallthru
      _
    // Predicated region
    $region6: #{_matmul_pallas.1} parent=1 // pred_check
      _
    $region7: #{_matmul_pallas.1} parent=1 // pred_check_branch
      %11 = sbr.rel (0) target = $region9
    $region8: #{_matmul_pallas.1} parent=1 // pred_region
      _
    $region9: #{_matmul_pallas.1} parent=1 // pred_fallthru
      _
    %p12 = scmp.eq.s32.totalorder 0, 0
    // Predicated region
    $region10: #{_matmul_pallas.1} parent=1 // pred_check
      %p13 = pneg %p12
    $region11: #{_matmul_pallas.1} parent=1 // pred_check_branch
      %15 = sbr.rel (%p13) target = $region13
    $region12: #{_matmul_pallas.1} parent=1 // pred_region
      %16 = vst [vmem:[#allocation2] sm:$0xff] 0.0
    $region13: #{_matmul_pallas.1} parent=1 // pred_fallthru
      _
    %v17 = vld [vmem:[%s0] sm:$0xff]
    %v18 = vld [vmem:[%s1] sm:$0xff]
    %v19 = vld [vmem:[%s1 + $0x8] sm:$0xff]
    %v20 = vld [vmem:[%s1 + $0x10] sm:$0xff]
    %v21 = vld [vmem:[%s1 + $0x18] sm:$0xff]
    %v22 = vld [vmem:[%s1 + $0x20] sm:$0xff]
    %v23 = vld [vmem:[%s1 + $0x28] sm:$0xff]
    %v24 = vld [vmem:[%s1 + $0x30] sm:$0xff]
    %v25 = vld [vmem:[%s1 + $0x38] sm:$0xff]
    %v26 = vld [vmem:[%s1 + $0x40] sm:$0xff]
    %v27 = vld [vmem:[%s1 + $0x48] sm:$0xff]
    %v28 = vld [vmem:[%s1 + $0x50] sm:$0xff]
    %v29 = vld [vmem:[%s1 + $0x58] sm:$0xff]
    %v30 = vld [vmem:[%s1 + $0x60] sm:$0xff]
    %v31 = vld [vmem:[%s1 + $0x68] sm:$0xff]
    %v32 = vld [vmem:[%s1 + $0x70] sm:$0xff]
    %v33 = vld [vmem:[%s1 + $0x78] sm:$0xff]
    %v34 = vld [vmem:[#allocation2] sm:$0xff]
    %35 = vmatpush.xpose.msra.mxu0 %v33
    %36 = vmatpush.xpose.msra.mxu0 %v32
    %37 = vmatpush.xpose.msra.mxu0 %v31
    %38 = vmatpush.xpose.msra.mxu0 %v30
    %39 = vmatpush.xpose.msra.mxu0 %v29
    %40 = vmatpush.xpose.msra.mxu0 %v28
    %41 = vmatpush.xpose.msra.mxu0 %v27
    %42 = vmatpush.xpose.msra.mxu0 %v26
    %43 = vmatpush.xpose.msra.mxu0 %v25
    %44 = vmatpush.xpose.msra.mxu0 %v24
    %45 = vmatpush.xpose.msra.mxu0 %v23
    %46 = vmatpush.xpose.msra.mxu0 %v22
    %47 = vmatpush.xpose.msra.mxu0 %v21
    %48 = vmatpush.xpose.msra.mxu0 %v20
    %49 = vmatpush.xpose.msra.mxu0 %v19
    %50 = vmatpush.xpose.msra.mxu0 %v18
    %51 = vmatmul.f32.gmra.mxu0 %v17
    %v52 = vpop.f32.mrf.mxu0
    %v53 = vadd.f32 0.0, %v52
    %54 = vdwg.mxu0
    %v55 = vadd.f32 %v34, %v53
    %56 = vst [vmem:[#allocation2] sm:$0xff] %v55
    // Predicated region
    $region14: #{_matmul_pallas.1} parent=1 // pred_check
      %p57 = pneg %p12
    $region15: #{_matmul_pallas.1} parent=1 // pred_check_branch
      %59 = sbr.rel (%p57) target = $region17
    $region16: #{_matmul_pallas.1} parent=1 // pred_region
      %v60 = vld [vmem:[#allocation2] sm:$0xff]
      %61 = vst [vmem:[#allocation3] sm:$0xff] %v60
    $region17: #{_matmul_pallas.1} parent=1 // pred_fallthru
      _
    // Predicated region
    $region18: #{_matmul_pallas.1} parent=1 // pred_check
      _
    $region19: #{_matmul_pallas.1} parent=1 // pred_check_branch
      %63 = sbr.rel (0) target = $region21
    $region20: #{_matmul_pallas.1} parent=1 // pred_region
      %65 = vsyncadd [#allocation4], 0
      %s67 = sshll.u32 [#allocation3], 4
      %s68 = int_to_ptr.vmem [resolvable:$true] %s67
      %s69 = sshll.u32 %s2, 4
      %s70 = int_to_ptr.hbm [resolvable:$true] %s69
      %72 = dma.vmem_to_hbm [thread:$0]  %s68, 128, %s70, [#allocation4]
    $region21: #{_matmul_pallas.1} parent=1 // pred_fallthru
      _
    // Predicated region
    $region22: #{_matmul_pallas.1} parent=1 // pred_check
      _
    $region23: #{_matmul_pallas.1} parent=1 // pred_check_branch
      %74 = sbr.rel (0) target = $region25
    $region24: #{_matmul_pallas.1} parent=1 // pred_region
      %76 = dma.done [#allocation4], 128
    $region25: #{_matmul_pallas.1} parent=1 // pred_fallthru
      _
    %77 = vsyncpa [#allocation4], 1

</llo_original>
